<compile_context>
chip_gen: v5e
topology: v5e:2x2
jax: 0.10.0
libtpu: 0.0.40
codegen_flags: <defaults>
</compile_context>

<pallas_src>
import math

import jax
import jax.numpy as jnp
from jax import lax
from jax.experimental import pallas as pl
from jax.experimental.pallas import tpu as pltpu


def _round_up(v, m):
    return (v + m - 1) // m * m


def _lora_linear_kernel(x_ref, w_ref, b_ref, a_ref, bb_ref, o_ref,
                        acc_ref, t_ref):
    """Grid = (i over M tiles, j over N tiles, k over K tiles)."""
    j = pl.program_id(1)
    k = pl.program_id(2)
    nk = pl.num_programs(2)

    # ---- init ----
    @pl.when(k == 0)
    def _():
        acc_ref[...] = jnp.zeros_like(acc_ref)

    @pl.when((j == 0) & (k == 0))
    def _():
        t_ref[...] = jnp.zeros_like(t_ref)

    # ---- base matmul partial: x[tm,tk] @ W[tn,tk]^T  (MXU, fp32 acc) ----
    acc_ref[...] += lax.dot_general(
        x_ref[...], w_ref[...],
        dimension_numbers=(((1,), (1,)), ((), ())),
        preferred_element_type=jnp.float32)

    # ---- LoRA rank projection t = x @ A^T, computed once per M tile ----
    @pl.when(j == 0)
    def _():
        t_ref[...] += lax.dot_general(
            x_ref[...], a_ref[...],
            dimension_numbers=(((1,), (1,)), ((), ())),
            preferred_element_type=jnp.float32)

    # ---- epilogue: bias + LoRA expansion + cast + lane-dense store ----
    @pl.when(k == nk - 1)
    def _():
        # scaling (alpha / sqrt(rank)) was folded into bb_ref in the wrapper.
        lora = lax.dot_general(
            t_ref[...].astype(bb_ref.dtype), bb_ref[...],
            dimension_numbers=(((1,), (1,)), ((), ())),
            preferred_element_type=jnp.float32)
        o_ref[...] = (acc_ref[...] + b_ref[...] + lora).astype(o_ref.dtype)


def prepare_lora_weights(w_base, bias, lora_a, lora_b, *, alpha, rank,
                         tn=128, tk=128, r_pad=128, mxu_dtype=jnp.bfloat16):
    """One-time weight preprocessing (do at weight-load time, NOT per call):
    pad to lane-dense tile multiples, cast MXU operands to bf16 and fold the
    LoRA scaling alpha/sqrt(rank) into lora_B. Bias stays fp32 (epilogue math
    is fp32 on all chips, incl. v5e)."""
    N, K = w_base.shape
    R = lora_a.shape[0]
    scaling = alpha / math.sqrt(rank)

    Np, Kp, Rp = _round_up(N, tn), _round_up(K, tk), _round_up(R, r_pad)

    if bias is None:
        bias = jnp.zeros((N,), jnp.float32)

    w = jnp.pad(w_base.astype(mxu_dtype), ((0, Np - N), (0, Kp - K)))
    b = jnp.pad(bias.astype(jnp.float32), (0, Np - N)).reshape(1, Np)
    a = jnp.pad(lora_a.astype(mxu_dtype), ((0, Rp - R), (0, Kp - K)))
    bb = jnp.pad((lora_b.astype(jnp.float32) * scaling).astype(mxu_dtype),
                 ((0, Np - N), (0, Rp - R)))
    return dict(w=w, b=b, a=a, bb=bb, n=N, k=K, tn=tn, tk=tk, rp=Rp,
                mxu_dtype=mxu_dtype)


def lora_linear(x, prepared, *, tm=128):
    """x: [..., K]; prepared: output of prepare_lora_weights."""
    w, b, a, bb = prepared["w"], prepared["b"], prepared["a"], prepared["bb"]
    N, K = prepared["n"], prepared["k"]
    tn, tk, Rp = prepared["tn"], prepared["tk"], prepared["rp"]
    mxu_dtype = prepared["mxu_dtype"]

    orig_shape = x.shape
    assert orig_shape[-1] == K
    x2d = x.reshape(-1, K)
    M = x2d.shape[0]
    Np, Kp = w.shape
    Mp = _round_up(M, tm)

    # TODO(synk): lora_dropout > 0 (nn.Dropout on the LoRA branch) is not
    # implemented; only the default p=0 (Identity) semantics are supported.
    xp = jnp.pad(x2d.astype(mxu_dtype), ((0, Mp - M), (0, Kp - K)))

    grid = (Mp // tm, Np // tn, Kp // tk)

    out = pl.pallas_call(
        _lora_linear_kernel,
        out_shape=jax.ShapeDtypeStruct((Mp, Np), x.dtype),
        grid_spec=pltpu.PrefetchScalarGridSpec(
            num_scalar_prefetch=0,
            grid=grid,
            in_specs=[
                pl.BlockSpec((tm, tk), lambda i, j, k: (i, k)),   # x   [M,K]
                pl.BlockSpec((tn, tk), lambda i, j, k: (j, k)),   # W   [N,K]
                pl.BlockSpec((1, tn), lambda i, j, k: (0, j)),    # b   [1,N]
                pl.BlockSpec((Rp, tk), lambda i, j, k: (0, k)),   # A   [R,K]
                pl.BlockSpec((tn, Rp), lambda i, j, k: (j, 0)),   # B*s [N,R]
            ],
            out_specs=pl.BlockSpec((tm, tn), lambda i, j, k: (i, j)),
            scratch_shapes=[
                pltpu.VMEM((tm, tn), jnp.float32),   # base-matmul accumulator
                pltpu.VMEM((tm, Rp), jnp.float32),   # LoRA rank projection t
            ],
        ),
        compiler_params=pltpu.CompilerParams(
            dimension_semantics=("parallel", "arbitrary", "arbitrary"),
            vmem_limit_bytes=32 * 1024 * 1024,
        ),
    )(xp, w, b, a, bb)

    return out[:M, :N].reshape(*orig_shape[:-1], N)


def lora_linear_ref(x, w_base, bias, lora_a, lora_b, *, alpha, rank):
    scaling = alpha / math.sqrt(rank)
    base = jnp.einsum("...k,nk->...n", x, w_base) + bias
    t = jnp.einsum("...k,rk->...r", x, lora_a)
    lora = jnp.einsum("...r,nr->...n", t, lora_b)
    return base + lora * scaling


if __name__ == "__main__":
    # Small but multi-tile shapes: grid = (2 M-tiles, 3 N-tiles, 2 K-tiles),
    # exercising k-accumulation, t-reuse across N tiles, and M padding.
    batch, seq = 2, 80
    in_features, out_features, rank, alpha = 256, 384, 4, 8.0

    key = jax.random.PRNGKey(0)
    kx, kw, kb, ka, kbb = jax.random.split(key, 5)

    x = jax.random.normal(kx, (batch, seq, in_features), dtype=jnp.float32)
    w_base = jax.random.normal(kw, (out_features, in_features),
                               dtype=jnp.float32) * 0.05
    bias = jax.random.normal(kb, (out_features,), dtype=jnp.float32) * 0.1
    lora_a = jax.random.normal(ka, (rank, in_features),
                               dtype=jnp.float32) * 0.05
    # Module's __init__ zeroes lora_B; use non-zero B so the LoRA branch is
    # actually exercised.
    lora_b = jax.random.normal(kbb, (out_features, rank),
                               dtype=jnp.float32) * 0.05

    prepared = prepare_lora_weights(w_base, bias, lora_a, lora_b,
                                    alpha=alpha, rank=rank)
    out = lora_linear(x, prepared)
    jax.block_until_ready(out)

    # Reference on bf16-rounded operands (the kernel feeds the MXU in bf16
    # with fp32 accumulation), math in fp32.
    to32 = lambda a: a.astype(jnp.bfloat16).astype(jnp.float32)
    ref = lora_linear_ref(to32(x), to32(w_base), bias, to32(lora_a),
                          to32(lora_b), alpha=alpha, rank=rank)

    assert out.shape == (batch, seq, out_features)
    assert jnp.allclose(out, ref, atol=2e-2, rtol=2e-2), \
        float(jnp.max(jnp.abs(out - ref)))

    print("KERNEL_OK")
</pallas_src>

<mosaic_0001>
module attributes {stable_mosaic.version = 11 : i64} {
  func.func @_lora_linear_kernel(%arg0: i32, %arg1: i32, %arg2: i32, %arg3: memref<128x128xbf16, #tpu.memory_space<vmem>>, %arg4: memref<128x128xbf16, #tpu.memory_space<vmem>>, %arg5: memref<1x128xf32, #tpu.memory_space<vmem>>, %arg6: memref<128x128xbf16, #tpu.memory_space<vmem>>, %arg7: memref<128x128xbf16, #tpu.memory_space<vmem>>, %arg8: memref<128x128xf32, #tpu.memory_space<vmem>>, %arg9: memref<128x128xf32, #tpu.memory_space<vmem>>, %arg10: memref<128x128xf32, #tpu.memory_space<vmem>>) attributes {dimension_semantics = [#tpu.dimension_semantics<parallel>, #tpu.dimension_semantics<arbitrary>, #tpu.dimension_semantics<arbitrary>], iteration_bounds = array<i64: 2, 3, 2>, scalar_prefetch = 0 : i64, scratch_operands = 2 : i64, tpu.core_type = #tpu.core_type<tc>, window_params = [{transform_indices = @transform_0, window_bounds = array<i64: 128, 128>}, {transform_indices = @transform_1, window_bounds = array<i64: 128, 128>}, {transform_indices = @transform_2, window_bounds = array<i64: 1, 128>}, {transform_indices = @transform_3, window_bounds = array<i64: 128, 128>}, {transform_indices = @transform_4, window_bounds = array<i64: 128, 128>}, {transform_indices = @transform_5, window_bounds = array<i64: 128, 128>}]} {
    %c0_i32 = arith.constant 0 : i32
    %0 = arith.cmpi eq, %arg2, %c0_i32 : i32
    %1 = arith.extui %0 : i1 to i32
    %c0_i32_0 = arith.constant 0 : i32
    %2 = arith.cmpi ne, %1, %c0_i32_0 : i32
    scf.if %2 {
      %cst_14 = arith.constant 0.000000e+00 : f32
      %20 = vector.broadcast %cst_14 : f32 to vector<128x128xf32>
      %c0_15 = arith.constant 0 : index
      %c0_16 = arith.constant 0 : index
      %21 = vector.load %arg9[%c0_15, %c0_16] : memref<128x128xf32, #tpu.memory_space<vmem>>, vector<128x128xf32>
      tpu.vector_store %arg9[%c0_15, %c0_16], %20 {strides = array<i32>} : memref<128x128xf32, #tpu.memory_space<vmem>>, vector<128x128xf32>,
    } else {
    }
    %c0_i32_1 = arith.constant 0 : i32
    %3 = arith.cmpi eq, %arg1, %c0_i32_1 : i32
    %c0_i32_2 = arith.constant 0 : i32
    %4 = arith.cmpi eq, %arg2, %c0_i32_2 : i32
    %5 = arith.andi %3, %4 : i1
    %6 = arith.extui %5 : i1 to i32
    %c0_i32_3 = arith.constant 0 : i32
    %7 = arith.cmpi ne, %6, %c0_i32_3 : i32
    scf.if %7 {
      %cst_14 = arith.constant 0.000000e+00 : f32
      %20 = vector.broadcast %cst_14 : f32 to vector<128x128xf32>
      %c0_15 = arith.constant 0 : index
      %c0_16 = arith.constant 0 : index
      %21 = vector.load %arg10[%c0_15, %c0_16] : memref<128x128xf32, #tpu.memory_space<vmem>>, vector<128x128xf32>
      tpu.vector_store %arg10[%c0_15, %c0_16], %20 {strides = array<i32>} : memref<128x128xf32, #tpu.memory_space<vmem>>, vector<128x128xf32>,
    } else {
    }
    %c0 = arith.constant 0 : index
    %c0_4 = arith.constant 0 : index
    %8 = vector.load %arg9[%c0, %c0_4] : memref<128x128xf32, #tpu.memory_space<vmem>>, vector<128x128xf32>
    %c0_5 = arith.constant 0 : index
    %c0_6 = arith.constant 0 : index
    %9 = vector.load %arg3[%c0_5, %c0_6] : memref<128x128xbf16, #tpu.memory_space<vmem>>, vector<128x128xbf16>
    %c0_7 = arith.constant 0 : index
    %c0_8 = arith.constant 0 : index
    %10 = vector.load %arg4[%c0_7, %c0_8] : memref<128x128xbf16, #tpu.memory_space<vmem>>, vector<128x128xbf16>
    %cst = arith.constant dense<0.000000e+00> : vector<128x128xf32>
    %11 = tpu.matmul %9, %10, %cst {dimension_numbers = #tpu.dot_dimension_numbers<[1], [1], [0], [0], [0, 0, 1, 0], [], []>} : vector<128x128xbf16>, vector<128x128xbf16>, vector<128x128xf32> -> vector<128x128xf32>
    %12 = arith.addf %8, %11 : vector<128x128xf32>
    %c0_9 = arith.constant 0 : index
    %c0_10 = arith.constant 0 : index
    %13 = vector.load %arg9[%c0_9, %c0_10] : memref<128x128xf32, #tpu.memory_space<vmem>>, vector<128x128xf32>
    tpu.vector_store %arg9[%c0_9, %c0_10], %12 {strides = array<i32>} : memref<128x128xf32, #tpu.memory_space<vmem>>, vector<128x128xf32>,
    %c0_i32_11 = arith.constant 0 : i32
    %14 = arith.cmpi eq, %arg1, %c0_i32_11 : i32
    %15 = arith.extui %14 : i1 to i32
    %c0_i32_12 = arith.constant 0 : i32
    %16 = arith.cmpi ne, %15, %c0_i32_12 : i32
    scf.if %16 {
      %c0_14 = arith.constant 0 : index
      %c0_15 = arith.constant 0 : index
      %20 = vector.load %arg10[%c0_14, %c0_15] : memref<128x128xf32, #tpu.memory_space<vmem>>, vector<128x128xf32>
      %c0_16 = arith.constant 0 : index
      %c0_17 = arith.constant 0 : index
      %21 = vector.load %arg3[%c0_16, %c0_17] : memref<128x128xbf16, #tpu.memory_space<vmem>>, vector<128x128xbf16>
      %c0_18 = arith.constant 0 : index
      %c0_19 = arith.constant 0 : index
      %22 = vector.load %arg6[%c0_18, %c0_19] : memref<128x128xbf16, #tpu.memory_space<vmem>>, vector<128x128xbf16>
      %cst_20 = arith.constant dense<0.000000e+00> : vector<128x128xf32>
      %23 = tpu.matmul %21, %22, %cst_20 {dimension_numbers = #tpu.dot_dimension_numbers<[1], [1], [0], [0], [0, 0, 1, 0], [], []>} : vector<128x128xbf16>, vector<128x128xbf16>, vector<128x128xf32> -> vector<128x128xf32>
      %24 = arith.addf %20, %23 : vector<128x128xf32>
      %c0_21 = arith.constant 0 : index
      %c0_22 = arith.constant 0 : index
      %25 = vector.load %arg10[%c0_21, %c0_22] : memref<128x128xf32, #tpu.memory_space<vmem>>, vector<128x128xf32>
      tpu.vector_store %arg10[%c0_21, %c0_22], %24 {strides = array<i32>} : memref<128x128xf32, #tpu.memory_space<vmem>>, vector<128x128xf32>,
    } else {
    }
    %c1_i32 = arith.constant 1 : i32
    %17 = arith.cmpi eq, %arg2, %c1_i32 : i32
    %18 = arith.extui %17 : i1 to i32
    %c0_i32_13 = arith.constant 0 : i32
    %19 = arith.cmpi ne, %18, %c0_i32_13 : i32
    scf.if %19 {
      %c0_14 = arith.constant 0 : index
      %c0_15 = arith.constant 0 : index
      %20 = vector.load %arg10[%c0_14, %c0_15] : memref<128x128xf32, #tpu.memory_space<vmem>>, vector<128x128xf32>
      %21 = arith.truncf %20 : vector<128x128xf32> to vector<128x128xbf16>
      %c0_16 = arith.constant 0 : index
      %c0_17 = arith.constant 0 : index
      %22 = vector.load %arg7[%c0_16, %c0_17] : memref<128x128xbf16, #tpu.memory_space<vmem>>, vector<128x128xbf16>
      %cst_18 = arith.constant dense<0.000000e+00> : vector<128x128xf32>
      %23 = tpu.matmul %21, %22, %cst_18 {dimension_numbers = #tpu.dot_dimension_numbers<[1], [1], [0], [0], [0, 0, 1, 0], [], []>} : vector<128x128xbf16>, vector<128x128xbf16>, vector<128x128xf32> -> vector<128x128xf32>
      %c0_19 = arith.constant 0 : index
      %c0_20 = arith.constant 0 : index
      %24 = vector.load %arg9[%c0_19, %c0_20] : memref<128x128xf32, #tpu.memory_space<vmem>>, vector<128x128xf32>
      %c0_21 = arith.constant 0 : index
      %c0_22 = arith.constant 0 : index
      %25 = vector.load %arg5[%c0_21, %c0_22] : memref<1x128xf32, #tpu.memory_space<vmem>>, vector<1x128xf32>
      %26 = vector.broadcast %25 : vector<1x128xf32> to vector<128x128xf32>
      %27 = arith.addf %24, %26 : vector<128x128xf32>
      %28 = arith.addf %27, %23 : vector<128x128xf32>
      %c0_23 = arith.constant 0 : index
      %c0_24 = arith.constant 0 : index
      %29 = vector.load %arg8[%c0_23, %c0_24] : memref<128x128xf32, #tpu.memory_space<vmem>>, vector<128x128xf32>
      tpu.vector_store %arg8[%c0_23, %c0_24], %28 {strides = array<i32>} : memref<128x128xf32, #tpu.memory_space<vmem>>, vector<128x128xf32>,
    } else {
    }
    return
  }
  func.func @transform_0(%arg0: i32, %arg1: i32, %arg2: i32) -> (i32, i32) {
    %c0_i32 = arith.constant 0 : i32
    return %arg0, %arg2 : i32, i32
  }
  func.func @transform_1(%arg0: i32, %arg1: i32, %arg2: i32) -> (i32, i32) {
    %c0_i32 = arith.constant 0 : i32
    return %arg1, %arg2 : i32, i32
  }
  func.func @transform_2(%arg0: i32, %arg1: i32, %arg2: i32) -> (i32, i32) {
    %c0_i32 = arith.constant 0 : i32
    %c0_i32_0 = arith.constant 0 : i32
    return %c0_i32, %arg1 : i32, i32
  }
  func.func @transform_3(%arg0: i32, %arg1: i32, %arg2: i32) -> (i32, i32) {
    %c0_i32 = arith.constant 0 : i32
    %c0_i32_0 = arith.constant 0 : i32
    return %c0_i32, %arg2 : i32, i32
  }
  func.func @transform_4(%arg0: i32, %arg1: i32, %arg2: i32) -> (i32, i32) {
    %c0_i32 = arith.constant 0 : i32
    %c0_i32_0 = arith.constant 0 : i32
    return %arg1, %c0_i32 : i32, i32
  }
  func.func @transform_5(%arg0: i32, %arg1: i32, %arg2: i32) -> (i32, i32) {
    %c0_i32 = arith.constant 0 : i32
    return %arg0, %arg1 : i32, i32
  }
}

</mosaic_0001>

<llo_original>
// kernel: tpu_custom_call.1
$region0: #{tpu_custom_call.1}
  #allocation0 [shape = 'u32[]', space=smem, size = 0x4, offset = 0x4, fixed_abs, tag = 'smem constant byte address 0x4 - core index']
  #allocation1 [shape = 'u32[72,128]{1,0:T(1,128)}', space=vmem, size = 0x9000, scoped, tag = 'internal scratch']
  #allocation2 [shape = 'f32[128,128]{1,0:T(8,128)}', space=vmem, size = 0x10000, scoped, tag = 'scratch operand']
  #allocation3 [shape = 'f32[128,128]{1,0:T(8,128)}', space=vmem, size = 0x10000, scoped, tag = 'scratch operand']
  %s0 = inlined_call_operand.hbm [shape: bf16[256,256], index: 0, kind: input, shape index: {}]
  %s1 = inlined_call_operand.hbm [shape: bf16[384,256], index: 1, kind: input, shape index: {}]
  %s2 = inlined_call_operand.hbm [shape: f32[1,384], index: 2, kind: input, shape index: {}]
  %s3 = inlined_call_operand.hbm [shape: bf16[128,256], index: 3, kind: input, shape index: {}]
  %s4 = inlined_call_operand.hbm [shape: bf16[384,128], index: 4, kind: input, shape index: {}]
  %s5 = inlined_call_operand.hbm [shape: f32[256,384], index: 5, kind: output, shape index: {}]
  %s6 = sld [smem:[#allocation0]]
  $region89: #{tpu_custom_call.1} parent=0
    _
  %s8 = ssub.s32 1, %s6
  %s9 = scalar_select 0, %s8, %s6
  $region1: #{tpu_custom_call.1} parent=0
    #allocation4 [shape = 'u8[65536]{0}', space=vmem, size = 0x10000, scoped, tag = 'input window, operand 0']
    #allocation5 [shape = 's32[2]{0}', space=sflag, size = 0x8, scoped, tag = 'scoped memory for tpu_custom_call.1']
    #allocation6 [shape = 's32[2]{0}', space=sflag, size = 0x8, scoped, tag = 'scoped memory for tpu_custom_call.1']
    #allocation7 [shape = 'u8[65536]{0}', space=vmem, size = 0x10000, scoped, tag = 'input window, operand 1']
    #allocation8 [shape = 's32[2]{0}', space=sflag, size = 0x8, scoped, tag = 'scoped memory for tpu_custom_call.1']
    #allocation9 [shape = 'u8[1024]{0}', space=vmem, size = 0x400, scoped, tag = 'input window, operand 2']
    #allocation10 [shape = 'u8[65536]{0}', space=vmem, size = 0x10000, scoped, tag = 'input window, operand 3']
    #allocation11 [shape = 's32[2]{0}', space=sflag, size = 0x8, scoped, tag = 'scoped memory for tpu_custom_call.1']
    #allocation12 [shape = 'u8[65536]{0}', space=vmem, size = 0x10000, scoped, tag = 'input window, operand 4']
    #allocation13 [shape = 'u8[131072]{0}', space=vmem, size = 0x20000, scoped, tag = 'output window, operand 0']
    %10 = vsyncpa [#allocation5], 0
    %s11 = scalar_lea.sflag [#allocation5], 1
    %12 = vsyncpa %s11, 0
    %13 = vsyncpa [#allocation8], 0
    %s14 = scalar_lea.sflag [#allocation8], 1
    %15 = vsyncpa %s14, 0
    %16 = vsyncpa [#allocation11], 0
    %s17 = scalar_lea.sflag [#allocation11], 1
    %18 = vsyncpa %s17, 0
    %19 = vsyncpa [#allocation6], 0
    %s20 = scalar_lea.sflag [#allocation6], 1
    %21 = vsyncpa %s20, 0
    loop: start=0, step=1, limit=14
    $region2: #{tpu_custom_call.1} parent=1 // loop_pre_header
      _
    $region3: #{tpu_custom_call.1} parent=1 // loop_header
      %s23 = sphi 0, %s27
      %p24 = scmp.ge.s32.totalorder %s23, 14
      %s30 = sphi 0, %s49
      %s31 = sphi 0, %s45
      %s32 = sphi 0, %s41
      %s33 = sphi 0, %s30
      %s34 = sphi 0, %s31
      %s35 = sphi 0, %s32
      %s36 = sphi 0, %s33
      %s37 = sphi 0, %s34
      %s38 = sphi 0, %s35
      %s54 = sphi 0, %s56
      %s57 = sphi 0, %s54
      %s58 = sphi 0, %s57
      %s74 = sphi 0, %s58
      %s82 = sphi 0, %s84
      %s85 = sphi 0, %s82
      %s86 = sphi 0, %s85
      %s102 = sphi 0, %s86
      %s108 = sphi 0, %s110
      %s111 = sphi 0, %s108
      %s112 = sphi 0, %s111
      %s128 = sphi 0, %s112
      %s134 = sphi 0, %s136
      %s137 = sphi 0, %s134
      %s138 = sphi 0, %s137
      %s154 = sphi 0, %s138
      %s160 = sphi 0, %s162
      %s163 = sphi 0, %s160
      %s164 = sphi 0, %s163
      %s180 = sphi 0, %s164
      %s188 = sphi 0, %s190
      %s191 = sphi 0, %s188
      %s192 = sphi 0, %s191
      %s208 = sphi 0, %s192
    $region4: #{tpu_custom_call.1} parent=1 // loop_header_branch
      %26 = sbr.rel (%p24) target = $region8
    $region5: #{tpu_custom_call.1} parent=1 // loop_body
      %s28 = ssub.s32 %s23, 1
      %s29 = ssub.s32 %s23, 2
      %s39 = sadd.s32 1, %s32
      %p40 = scmp.ge.s32.totalorder %s39, 2
      %s41 = scalar_select %p40, 0, %s39
      %s42 = sadd.s32 1, %s31
      %s43 = scalar_select %p40, %s42, %s31
      %p44 = scmp.ge.s32.totalorder %s43, 3
      %s45 = scalar_select %p44, 0, %s43
      %s46 = sadd.s32 1, %s30
      %s47 = scalar_select %p44, %s46, %s30
      %p48 = scmp.ge.s32.totalorder %s47, 2
      %s49 = scalar_select %p48, 0, %s47
      %s50 = ssub.s32 %s30, %s49
      %s51 = ssub.s32 %s32, %s41
      %s52 = sor.u32 %s50, %s51
      %p53 = scmp.eq.s32.totalorder %s52, 0
      %s55 = sadd.s32 %s54, 1
      %s56 = scalar_select %p53, %s54, %s55
      %p59 = pneg %p53
      %p60 = scmp.eq.s32.totalorder %s23, 11
      %p61 = por %p59, %p60
      %p62 = scmp.ne.s32.totalorder %s54, %s57
      %p63 = scmp.eq.s32.totalorder %s23, 0
      %p64 = por %p62, %p63
      %p65 = scmp.ne.s32.totalorder %s54, %s57
      %p66 = scmp.eq.s32.totalorder %s28, 11
      %p67 = por %p65, %p66
      %p68 = scmp.ne.s32.totalorder %s57, %s58
      %p69 = scmp.eq.s32.totalorder %s28, 0
      %p70 = por %p68, %p69
      %p71 = scmp.ne.s32.totalorder %s57, %s58
      %p72 = scmp.eq.s32.totalorder %s29, 11
      %p73 = por %p71, %p72
      %p75 = scmp.ne.s32.totalorder %s58, %s74
      %p76 = scmp.eq.s32.totalorder %s29, 0
      %p77 = por %p75, %p76
      %s78 = ssub.s32 %s31, %s45
      %s79 = ssub.s32 %s32, %s41
      %s80 = sor.u32 %s78, %s79
      %p81 = scmp.eq.s32.totalorder %s80, 0
      %s83 = sadd.s32 %s82, 1
      %s84 = scalar_select %p81, %s82, %s83
      %p87 = pneg %p81
      %p88 = scmp.eq.s32.totalorder %s23, 11
      %p89 = por %p87, %p88
      %p90 = scmp.ne.s32.totalorder %s82, %s85
      %p91 = scmp.eq.s32.totalorder %s23, 0
      %p92 = por %p90, %p91
      %p93 = scmp.ne.s32.totalorder %s82, %s85
      %p94 = scmp.eq.s32.totalorder %s28, 11
      %p95 = por %p93, %p94
      %p96 = scmp.ne.s32.totalorder %s85, %s86
      %p97 = scmp.eq.s32.totalorder %s28, 0
      %p98 = por %p96, %p97
      %p99 = scmp.ne.s32.totalorder %s85, %s86
      %p100 = scmp.eq.s32.totalorder %s29, 11
      %p101 = por %p99, %p100
      %p103 = scmp.ne.s32.totalorder %s86, %s102
      %p104 = scmp.eq.s32.totalorder %s29, 0
      %p105 = por %p103, %p104
      %s106 = ssub.s32 %s31, %s45
      %p107 = scmp.eq.s32.totalorder %s106, 0
      %s109 = sadd.s32 %s108, 1
      %s110 = scalar_select %p107, %s108, %s109
      %p113 = pneg %p107
      %p114 = scmp.eq.s32.totalorder %s23, 11
      %p115 = por %p113, %p114
      %p116 = scmp.ne.s32.totalorder %s108, %s111
      %p117 = scmp.eq.s32.totalorder %s23, 0
      %p118 = por %p116, %p117
      %p119 = scmp.ne.s32.totalorder %s108, %s111
      %p120 = scmp.eq.s32.totalorder %s28, 11
      %p121 = por %p119, %p120
      %p122 = scmp.ne.s32.totalorder %s111, %s112
      %p123 = scmp.eq.s32.totalorder %s28, 0
      %p124 = por %p122, %p123
      %p125 = scmp.ne.s32.totalorder %s111, %s112
      %p126 = scmp.eq.s32.totalorder %s29, 11
      %p127 = por %p125, %p126
      %p129 = scmp.ne.s32.totalorder %s112, %s128
      %p130 = scmp.eq.s32.totalorder %s29, 0
      %p131 = por %p129, %p130
      %s132 = ssub.s32 %s32, %s41
      %p133 = scmp.eq.s32.totalorder %s132, 0
      %s135 = sadd.s32 %s134, 1
      %s136 = scalar_select %p133, %s134, %s135
      %p139 = pneg %p133
      %p140 = scmp.eq.s32.totalorder %s23, 11
      %p141 = por %p139, %p140
      %p142 = scmp.ne.s32.totalorder %s134, %s137
      %p143 = scmp.eq.s32.totalorder %s23, 0
      %p144 = por %p142, %p143
      %p145 = scmp.ne.s32.totalorder %s134, %s137
      %p146 = scmp.eq.s32.totalorder %s28, 11
      %p147 = por %p145, %p146
      %p148 = scmp.ne.s32.totalorder %s137, %s138
      %p149 = scmp.eq.s32.totalorder %s28, 0
      %p150 = por %p148, %p149
      %p151 = scmp.ne.s32.totalorder %s137, %s138
      %p152 = scmp.eq.s32.totalorder %s29, 11
      %p153 = por %p151, %p152
      %p155 = scmp.ne.s32.totalorder %s138, %s154
      %p156 = scmp.eq.s32.totalorder %s29, 0
      %p157 = por %p155, %p156
      %s158 = ssub.s32 %s31, %s45
      %p159 = scmp.eq.s32.totalorder %s158, 0
      %s161 = sadd.s32 %s160, 1
      %s162 = scalar_select %p159, %s160, %s161
      %p165 = pneg %p159
      %p166 = scmp.eq.s32.totalorder %s23, 11
      %p167 = por %p165, %p166
      %p168 = scmp.ne.s32.totalorder %s160, %s163
      %p169 = scmp.eq.s32.totalorder %s23, 0
      %p170 = por %p168, %p169
      %p171 = scmp.ne.s32.totalorder %s160, %s163
      %p172 = scmp.eq.s32.totalorder %s28, 11
      %p173 = por %p171, %p172
      %p174 = scmp.ne.s32.totalorder %s163, %s164
      %p175 = scmp.eq.s32.totalorder %s28, 0
      %p176 = por %p174, %p175
      %p177 = scmp.ne.s32.totalorder %s163, %s164
      %p178 = scmp.eq.s32.totalorder %s29, 11
      %p179 = por %p177, %p178
      %p181 = scmp.ne.s32.totalorder %s164, %s180
      %p182 = scmp.eq.s32.totalorder %s29, 0
      %p183 = por %p181, %p182
      %s184 = ssub.s32 %s30, %s49
      %s185 = ssub.s32 %s31, %s45
      %s186 = sor.u32 %s184, %s185
      %p187 = scmp.eq.s32.totalorder %s186, 0
      %s189 = sadd.s32 %s188, 1
      %s190 = scalar_select %p187, %s188, %s189
      %p193 = pneg %p187
      %p194 = scmp.eq.s32.totalorder %s23, 11
      %p195 = por %p193, %p194
      %p196 = scmp.ne.s32.totalorder %s188, %s191
      %p197 = scmp.eq.s32.totalorder %s23, 0
      %p198 = por %p196, %p197
      %p199 = scmp.ne.s32.totalorder %s188, %s191
      %p200 = scmp.eq.s32.totalorder %s28, 11
      %p201 = por %p199, %p200
      %p202 = scmp.ne.s32.totalorder %s191, %s192
      %p203 = scmp.eq.s32.totalorder %s28, 0
      %p204 = por %p202, %p203
      %p205 = scmp.ne.s32.totalorder %s191, %s192
      %p206 = scmp.eq.s32.totalorder %s29, 11
      %p207 = por %p205, %p206
      %p209 = scmp.ne.s32.totalorder %s192, %s208
      %p210 = scmp.eq.s32.totalorder %s29, 0
      %p211 = por %p209, %p210
      %p212 = scmp.le.s32.totalorder 1, %s23
      %p213 = scmp.lt.s32.totalorder %s23, 13
      %p214 = pnand %p212, %p213
      %p215 = pneg %p214
      // Predicated region
      $region9: #{tpu_custom_call.1} parent=5 // pred_check
        _
      $region10: #{tpu_custom_call.1} parent=5 // pred_check_branch
        %217 = sbr.rel (%p214) target = $region12
      $region11: #{tpu_custom_call.1} parent=5 // pred_region
        %s218 = ssub.s32 %s23, 1
      $region12: #{tpu_custom_call.1} parent=5 // pred_fallthru
        _
      %p219 = scmp.lt.s32.totalorder %s23, 12
      // Predicated region
      $region13: #{tpu_custom_call.1} parent=5 // pred_check
        %p220 = pneg %p219
      $region14: #{tpu_custom_call.1} parent=5 // pred_check_branch
        %222 = sbr.rel (%p220) target = $region16
      $region15: #{tpu_custom_call.1} parent=5 // pred_region
        // Predicated region
        $region17: #{tpu_custom_call.1} parent=15 // pred_check
          %p223 = pneg %p64
        $region18: #{tpu_custom_call.1} parent=15 // pred_check_branch
          %225 = sbr.rel (%p223) target = $region20
        $region19: #{tpu_custom_call.1} parent=15 // pred_region
          %s226 = sand.u32 %s54, 1
          %s227 = scalar_lea.sflag [#allocation5], %s226
          %s228 = sand.u32 %s54, 1
          %s229 = smul.addr %s228, 64
          %s230 = scalar_lea.vmem [#allocation4], %s229
          %s231 = smul.u32 16, %s30
          %233 = vsyncadd %s227, 0
          %s234 = smul.addr %s231, 2
          %s235 = sadd.s32 %s32, %s234
          %s236 = smul.addr %s235, 4
          %s237 = scalar_lea.hbm %s0, %s236
          %s238 = sshll.u32 %s237, 4
          %s239 = int_to_ptr.hbm [resolvable:$true] %s238
          %s240 = sshll.u32 %s230, 4
          %s241 = int_to_ptr.vmem [resolvable:$true] %s240
          %246 = dma.hbm_to_vmem [thread:$0]  %s239, 1024, %s241, %s227, 128, 64, 4
        $region20: #{tpu_custom_call.1} parent=15 // pred_fallthru
          _
        // Predicated region
        $region21: #{tpu_custom_call.1} parent=15 // pred_check
          %p247 = pneg %p92
        $region22: #{tpu_custom_call.1} parent=15 // pred_check_branch
          %249 = sbr.rel (%p247) target = $region24
        $region23: #{tpu_custom_call.1} parent=15 // pred_region
          %s250 = sand.u32 %s23, 1
          %s251 = scalar_lea.sflag [#allocation8], %s250
          %s252 = sand.u32 %s82, 1
          %s253 = smul.addr %s252, 64
          %s254 = scalar_lea.vmem [#allocation7], %s253
          %s255 = smul.u32 16, %s31
          %257 = vsyncadd %s251, 0
          %s258 = smul.addr %s255, 2
          %s259 = sadd.s32 %s32, %s258
          %s260 = smul.addr %s259, 4
          %s261 = scalar_lea.hbm %s1, %s260
          %s262 = sshll.u32 %s261, 4
          %s263 = int_to_ptr.hbm [resolvable:$true] %s262
          %s264 = sshll.u32 %s254, 4
          %s265 = int_to_ptr.vmem [resolvable:$true] %s264
          %270 = dma.hbm_to_vmem [thread:$0]  %s263, 1024, %s265, %s251, 128, 64, 4
        $region24: #{tpu_custom_call.1} parent=15 // pred_fallthru
          _
        // Predicated region
        $region25: #{tpu_custom_call.1} parent=15 // pred_check
          %p271 = pneg %p118
        $region26: #{tpu_custom_call.1} parent=15 // pred_check_branch
          %273 = sbr.rel (%p271) target = $region28
        $region27: #{tpu_custom_call.1} parent=15 // pred_region
          %s274 = sand.u32 %s23, 1
          %s275 = scalar_lea.sflag [#allocation8], %s274
          %s276 = sand.u32 %s108, 1
          %s277 = scalar_lea.vmem [#allocation9], %s276
          %279 = vsyncadd %s275, 0
          %s280 = scalar_lea.hbm %s2, %s31
          %s282 = sshll.u32 %s280, 4
          %s283 = int_to_ptr.hbm [resolvable:$true] %s282
          %s284 = sshll.u32 %s277, 4
          %s285 = int_to_ptr.vmem [resolvable:$true] %s284
          %287 = dma.hbm_to_vmem [thread:$0]  %s283, 16, %s285, %s275
        $region28: #{tpu_custom_call.1} parent=15 // pred_fallthru
          _
        // Predicated region
        $region29: #{tpu_custom_call.1} parent=15 // pred_check
          %p288 = pneg %p144
        $region30: #{tpu_custom_call.1} parent=15 // pred_check_branch
          %290 = sbr.rel (%p288) target = $region32
        $region31: #{tpu_custom_call.1} parent=15 // pred_region
          %s291 = sand.u32 %s23, 1
          %s292 = scalar_lea.sflag [#allocation11], %s291
          %s293 = sand.u32 %s134, 1
          %s294 = smul.addr %s293, 64
          %s295 = scalar_lea.vmem [#allocation10], %s294
          %297 = vsyncadd %s292, 0
          %s298 = smul.addr %s32, 4
          %s299 = scalar_lea.hbm %s3, %s298
          %s300 = sshll.u32 %s299, 4
          %s301 = int_to_ptr.hbm [resolvable:$true] %s300
          %s302 = sshll.u32 %s295, 4
          %s303 = int_to_ptr.vmem [resolvable:$true] %s302
          %308 = dma.hbm_to_vmem [thread:$0]  %s301, 1024, %s303, %s292, 128, 64, 4
        $region32: #{tpu_custom_call.1} parent=15 // pred_fallthru
          _
        // Predicated region
        $region33: #{tpu_custom_call.1} parent=15 // pred_check
          %p309 = pneg %p170
        $region34: #{tpu_custom_call.1} parent=15 // pred_check_branch
          %311 = sbr.rel (%p309) target = $region36
        $region35: #{tpu_custom_call.1} parent=15 // pred_region
          %s312 = sand.u32 %s23, 1
          %s313 = scalar_lea.sflag [#allocation11], %s312
          %s314 = sand.u32 %s160, 1
          %s315 = smul.addr %s314, 64
          %s316 = scalar_lea.vmem [#allocation12], %s315
          %s317 = smul.u32 16, %s31
          %319 = vsyncadd %s313, 0
          %s320 = smul.addr %s317, 4
          %s321 = scalar_lea.hbm %s4, %s320
          %s322 = sshll.u32 %s321, 4
          %s323 = int_to_ptr.hbm [resolvable:$true] %s322
          %s324 = sshll.u32 %s316, 4
          %s325 = int_to_ptr.vmem [resolvable:$true] %s324
          %330 = dma.hbm_to_vmem [thread:$0]  %s323, 1024, %s325, %s313, 64, 64, 4
        $region36: #{tpu_custom_call.1} parent=15 // pred_fallthru
          _
      $region16: #{tpu_custom_call.1} parent=5 // pred_fallthru
        _
      %p331 = scmp.le.s32.totalorder 1, %s23
      %p332 = scmp.lt.s32.totalorder %s23, 13
      %p333 = pnand %p331, %p332
      %p334 = pneg %p333
      // Predicated region
      $region37: #{tpu_custom_call.1} parent=5 // pred_check
        _
      $region38: #{tpu_custom_call.1} parent=5 // pred_check_branch
        %336 = sbr.rel (%p333) target = $region40
      $region39: #{tpu_custom_call.1} parent=5 // pred_region
        %s337 = ssub.s32 %s23, 1
        %s338 = sand.u32 %s57, 1
        %s339 = scalar_lea.sflag [#allocation5], %s338
        %s340 = sand.u32 %s57, 1
        %s341 = smul.addr %s340, 64
        %s342 = scalar_lea.vmem [#allocation4], %s341
        // Predicated region
        $region41: #{tpu_custom_call.1} parent=39 // pred_check
          %p343 = pneg %p70
        $region42: #{tpu_custom_call.1} parent=39 // pred_check_branch
          %345 = sbr.rel (%p343) target = $region44
        $region43: #{tpu_custom_call.1} parent=39 // pred_region
          %347 = dma.done %s339, 1024
        $region44: #{tpu_custom_call.1} parent=39 // pred_fallthru
          _
        %s348 = sand.u32 %s28, 1
        %s349 = scalar_lea.sflag [#allocation8], %s348
        %s350 = sand.u32 %s85, 1
        %s351 = smul.addr %s350, 64
        %s352 = scalar_lea.vmem [#allocation7], %s351
        // Predicated region
        $region45: #{tpu_custom_call.1} parent=39 // pred_check
          %p353 = pneg %p98
        $region46: #{tpu_custom_call.1} parent=39 // pred_check_branch
          %355 = sbr.rel (%p353) target = $region48
        $region47: #{tpu_custom_call.1} parent=39 // pred_region
          %357 = dma.done %s349, 1024
        $region48: #{tpu_custom_call.1} parent=39 // pred_fallthru
          _
        %s358 = sand.u32 %s28, 1
        %s359 = scalar_lea.sflag [#allocation8], %s358
        %s360 = sand.u32 %s111, 1
        %s361 = scalar_lea.vmem [#allocation9], %s360
        // Predicated region
        $region49: #{tpu_custom_call.1} parent=39 // pred_check
          %p362 = pneg %p124
        $region50: #{tpu_custom_call.1} parent=39 // pred_check_branch
          %364 = sbr.rel (%p362) target = $region52
        $region51: #{tpu_custom_call.1} parent=39 // pred_region
          %366 = dma.done %s359, 16
        $region52: #{tpu_custom_call.1} parent=39 // pred_fallthru
          _
        %s367 = sand.u32 %s28, 1
        %s368 = scalar_lea.sflag [#allocation11], %s367
        %s369 = sand.u32 %s137, 1
        %s370 = smul.addr %s369, 64
        %s371 = scalar_lea.vmem [#allocation10], %s370
        // Predicated region
        $region53: #{tpu_custom_call.1} parent=39 // pred_check
          %p372 = pneg %p150
        $region54: #{tpu_custom_call.1} parent=39 // pred_check_branch
          %374 = sbr.rel (%p372) target = $region56
        $region55: #{tpu_custom_call.1} parent=39 // pred_region
          %376 = dma.done %s368, 1024
        $region56: #{tpu_custom_call.1} parent=39 // pred_fallthru
          _
        %s377 = sand.u32 %s28, 1
        %s378 = scalar_lea.sflag [#allocation11], %s377
        %s379 = sand.u32 %s163, 1
        %s380 = smul.addr %s379, 64
        %s381 = scalar_lea.vmem [#allocation12], %s380
        // Predicated region
        $region57: #{tpu_custom_call.1} parent=39 // pred_check
          %p382 = pneg %p176
        $region58: #{tpu_custom_call.1} parent=39 // pred_check_branch
          %384 = sbr.rel (%p382) target = $region60
        $region59: #{tpu_custom_call.1} parent=39 // pred_region
          %386 = dma.done %s378, 1024
        $region60: #{tpu_custom_call.1} parent=39 // pred_fallthru
          _
        %s387 = sand.u32 %s57, 1
        %s388 = scalar_lea.sflag [#allocation5], %s387
        %s389 = sand.u32 %s57, 1
        %s390 = smul.addr %s389, 64
        %s391 = scalar_lea.vmem [#allocation4], %s390
        %p392 = pneg %p70
        %p393 = pneg %p67
        %s394 = sand.u32 %s28, 1
        %s395 = scalar_lea.sflag [#allocation8], %s394
        %s396 = sand.u32 %s85, 1
        %s397 = smul.addr %s396, 64
        %s398 = scalar_lea.vmem [#allocation7], %s397
        %p399 = pneg %p98
        %p400 = pneg %p95
        %s401 = sand.u32 %s28, 1
        %s402 = scalar_lea.sflag [#allocation8], %s401
        %s403 = sand.u32 %s111, 1
        %s404 = scalar_lea.vmem [#allocation9], %s403
        %p405 = pneg %p124
        %p406 = pneg %p121
        %s407 = sand.u32 %s28, 1
        %s408 = scalar_lea.sflag [#allocation11], %s407
        %s409 = sand.u32 %s137, 1
        %s410 = smul.addr %s409, 64
        %s411 = scalar_lea.vmem [#allocation10], %s410
        %p412 = pneg %p150
        %p413 = pneg %p147
        %s414 = sand.u32 %s28, 1
        %s415 = scalar_lea.sflag [#allocation11], %s414
        %s416 = sand.u32 %s163, 1
        %s417 = smul.addr %s416, 64
        %s418 = scalar_lea.vmem [#allocation12], %s417
        %p419 = pneg %p176
        %p420 = pneg %p173
        %p421 = pneg %p204
        %p422 = pneg %p201
        %s423 = sand.u32 %s191, 1
        %s424 = scalar_lea.sflag [#allocation6], %s423
        %s425 = sand.u32 %s191, 1
        %s426 = smul.addr %s425, 128
        %s427 = scalar_lea.vmem [#allocation13], %s426
        %s428 = smul.u32 16, %s33
        %s429 = smul.u32 16, %s34
        %s430 = smul.u32 16, %s34
        %s431 = smul.u32 16, %s33
        %p432 = scmp.eq.s32.totalorder %s35, 0
        // Predicated region
        $region61: #{tpu_custom_call.1} parent=39 // pred_check
          %p433 = pneg %p432
        $region62: #{tpu_custom_call.1} parent=39 // pred_check_branch
          %435 = sbr.rel (%p433) target = $region64
        $region63: #{tpu_custom_call.1} parent=39 // pred_region
          %436 = vst [vmem:[#allocation2] sm:$0xff] 0.0
          %437 = vst [vmem:[#allocation2 + $0x8] sm:$0xff] 0.0
          %438 = vst [vmem:[#allocation2 + $0x10] sm:$0xff] 0.0
          %439 = vst [vmem:[#allocation2 + $0x18] sm:$0xff] 0.0
          %440 = vst [vmem:[#allocation2 + $0x20] sm:$0xff] 0.0
          %441 = vst [vmem:[#allocation2 + $0x28] sm:$0xff] 0.0
          %442 = vst [vmem:[#allocation2 + $0x30] sm:$0xff] 0.0
          %443 = vst [vmem:[#allocation2 + $0x38] sm:$0xff] 0.0
          %444 = vst [vmem:[#allocation2 + $0x40] sm:$0xff] 0.0
          %445 = vst [vmem:[#allocation2 + $0x48] sm:$0xff] 0.0
          %446 = vst [vmem:[#allocation2 + $0x50] sm:$0xff] 0.0
          %447 = vst [vmem:[#allocation2 + $0x58] sm:$0xff] 0.0
          %448 = vst [vmem:[#allocation2 + $0x60] sm:$0xff] 0.0
          %449 = vst [vmem:[#allocation2 + $0x68] sm:$0xff] 0.0
          %450 = vst [vmem:[#allocation2 + $0x70] sm:$0xff] 0.0
          %451 = vst [vmem:[#allocation2 + $0x78] sm:$0xff] 0.0
        $region64: #{tpu_custom_call.1} parent=39 // pred_fallthru
          _
        %p452 = scmp.eq.s32.totalorder %s34, 0
        %p453 = pnand %p452, %p432
        %p454 = pneg %p453
        // Predicated region
        $region65: #{tpu_custom_call.1} parent=39 // pred_check
          _
        $region66: #{tpu_custom_call.1} parent=39 // pred_check_branch
          %456 = sbr.rel (%p453) target = $region68
        $region67: #{tpu_custom_call.1} parent=39 // pred_region
          %457 = vst [vmem:[#allocation3] sm:$0xff] 0.0
          %458 = vst [vmem:[#allocation3 + $0x8] sm:$0xff] 0.0
          %459 = vst [vmem:[#allocation3 + $0x10] sm:$0xff] 0.0
          %460 = vst [vmem:[#allocation3 + $0x18] sm:$0xff] 0.0
          %461 = vst [vmem:[#allocation3 + $0x20] sm:$0xff] 0.0
          %462 = vst [vmem:[#allocation3 + $0x28] sm:$0xff] 0.0
          %463 = vst [vmem:[#allocation3 + $0x30] sm:$0xff] 0.0
          %464 = vst [vmem:[#allocation3 + $0x38] sm:$0xff] 0.0
          %465 = vst [vmem:[#allocation3 + $0x40] sm:$0xff] 0.0
          %466 = vst [vmem:[#allocation3 + $0x48] sm:$0xff] 0.0
          %467 = vst [vmem:[#allocation3 + $0x50] sm:$0xff] 0.0
          %468 = vst [vmem:[#allocation3 + $0x58] sm:$0xff] 0.0
          %469 = vst [vmem:[#allocation3 + $0x60] sm:$0xff] 0.0
          %470 = vst [vmem:[#allocation3 + $0x68] sm:$0xff] 0.0
          %471 = vst [vmem:[#allocation3 + $0x70] sm:$0xff] 0.0
          %472 = vst [vmem:[#allocation3 + $0x78] sm:$0xff] 0.0
        $region68: #{tpu_custom_call.1} parent=39 // pred_fallthru
          _
        %v473 = vld [vmem:[#allocation2] sm:$0xff]
        %v474 = vld [vmem:[#allocation2 + $0x8] sm:$0xff]
        %v475 = vld [vmem:[#allocation2 + $0x10] sm:$0xff]
        %v476 = vld [vmem:[#allocation2 + $0x18] sm:$0xff]
        %v477 = vld [vmem:[#allocation2 + $0x20] sm:$0xff]
        %v478 = vld [vmem:[#allocation2 + $0x28] sm:$0xff]
        %v479 = vld [vmem:[#allocation2 + $0x30] sm:$0xff]
        %v480 = vld [vmem:[#allocation2 + $0x38] sm:$0xff]
        %v481 = vld [vmem:[#allocation2 + $0x40] sm:$0xff]
        %v482 = vld [vmem:[#allocation2 + $0x48] sm:$0xff]
        %v483 = vld [vmem:[#allocation2 + $0x50] sm:$0xff]
        %v484 = vld [vmem:[#allocation2 + $0x58] sm:$0xff]
        %v485 = vld [vmem:[#allocation2 + $0x60] sm:$0xff]
        %v486 = vld [vmem:[#allocation2 + $0x68] sm:$0xff]
        %v487 = vld [vmem:[#allocation2 + $0x70] sm:$0xff]
        %v488 = vld [vmem:[#allocation2 + $0x78] sm:$0xff]
        %v489 = vld [vmem:[%s342] sm:$0xf]
        %v490 = vld [vmem:[%s342 + $0x4] sm:$0xf]
        %v491 = vld [vmem:[%s342 + $0x8] sm:$0xf]
        %v492 = vld [vmem:[%s342 + $0xc] sm:$0xf]
        %v493 = vld [vmem:[%s342 + $0x10] sm:$0xf]
        %v494 = vld [vmem:[%s342 + $0x14] sm:$0xf]
        %v495 = vld [vmem:[%s342 + $0x18] sm:$0xf]
        %v496 = vld [vmem:[%s342 + $0x1c] sm:$0xf]
        %v497 = vld [vmem:[%s342 + $0x20] sm:$0xf]
        %v498 = vld [vmem:[%s342 + $0x24] sm:$0xf]
        %v499 = vld [vmem:[%s342 + $0x28] sm:$0xf]
        %v500 = vld [vmem:[%s342 + $0x2c] sm:$0xf]
        %v501 = vld [vmem:[%s342 + $0x30] sm:$0xf]
        %v502 = vld [vmem:[%s342 + $0x34] sm:$0xf]
        %v503 = vld [vmem:[%s342 + $0x38] sm:$0xf]
        %v504 = vld [vmem:[%s342 + $0x3c] sm:$0xf]
        %v505 = vld [vmem:[%s352] sm:$0xf]
        %v506 = vld [vmem:[%s352 + $0x4] sm:$0xf]
        %v507 = vld [vmem:[%s352 + $0x8] sm:$0xf]
        %v508 = vld [vmem:[%s352 + $0xc] sm:$0xf]
        %v509 = vld [vmem:[%s352 + $0x10] sm:$0xf]
        %v510 = vld [vmem:[%s352 + $0x14] sm:$0xf]
        %v511 = vld [vmem:[%s352 + $0x18] sm:$0xf]
        %v512 = vld [vmem:[%s352 + $0x1c] sm:$0xf]
        %v513 = vld [vmem:[%s352 + $0x20] sm:$0xf]
        %v514 = vld [vmem:[%s352 + $0x24] sm:$0xf]
        %v515 = vld [vmem:[%s352 + $0x28] sm:$0xf]
        %v516 = vld [vmem:[%s352 + $0x2c] sm:$0xf]
        %v517 = vld [vmem:[%s352 + $0x30] sm:$0xf]
        %v518 = vld [vmem:[%s352 + $0x34] sm:$0xf]
        %v519 = vld [vmem:[%s352 + $0x38] sm:$0xf]
        %v520 = vld [vmem:[%s352 + $0x3c] sm:$0xf]
        %v537 = vunpack.c.l.b16 %v489
        %v538 = vunpack.c.l.b16 %v490
        %v539 = vunpack.c.l.b16 %v491
        %v540 = vunpack.c.l.b16 %v492
        %v541 = vunpack.c.l.b16 %v493
        %v542 = vunpack.c.l.b16 %v494
        %v543 = vunpack.c.l.b16 %v495
        %v544 = vunpack.c.l.b16 %v496
        %v545 = vunpack.c.l.b16 %v497
        %v546 = vunpack.c.l.b16 %v498
        %v547 = vunpack.c.l.b16 %v499
        %v548 = vunpack.c.l.b16 %v500
        %v549 = vunpack.c.l.b16 %v501
        %v550 = vunpack.c.l.b16 %v502
        %v551 = vunpack.c.l.b16 %v503
        %v552 = vunpack.c.l.b16 %v504
        %v553 = vpack.c.b16 %v538, %v537
        %v554 = vpack.c.b16 %v540, %v539
        %v555 = vpack.c.b16 %v542, %v541
        %v556 = vpack.c.b16 %v544, %v543
        %v557 = vpack.c.b16 %v546, %v545
        %v558 = vpack.c.b16 %v548, %v547
        %v559 = vpack.c.b16 %v550, %v549
        %v560 = vpack.c.b16 %v552, %v551
        %v585 = vunpack.c.l.b16 %v505
        %v586 = vunpack.c.l.b16 %v506
        %v587 = vunpack.c.l.b16 %v507
        %v588 = vunpack.c.l.b16 %v508
        %v589 = vunpack.c.l.b16 %v509
        %v590 = vunpack.c.l.b16 %v510
        %v591 = vunpack.c.l.b16 %v511
        %v592 = vunpack.c.l.b16 %v512
        %v593 = vunpack.c.l.b16 %v513
        %v594 = vunpack.c.l.b16 %v514
        %v595 = vunpack.c.l.b16 %v515
        %v596 = vunpack.c.l.b16 %v516
        %v597 = vunpack.c.l.b16 %v517
        %v598 = vunpack.c.l.b16 %v518
        %v599 = vunpack.c.l.b16 %v519
        %v600 = vunpack.c.l.b16 %v520
        %v601 = vpack.c.b16 %v586, %v585
        %v602 = vpack.c.b16 %v588, %v587
        %v603 = vpack.c.b16 %v590, %v589
        %v604 = vpack.c.b16 %v592, %v591
        %v605 = vpack.c.b16 %v594, %v593
        %v606 = vpack.c.b16 %v596, %v595
        %v607 = vpack.c.b16 %v598, %v597
        %v608 = vpack.c.b16 %v600, %v599
        %617 = vmatpush.bf16.xpose.msra.mxu0 %v608
        %618 = vmatpush.bf16.xpose.msra.mxu0 %v607
        %619 = vmatpush.bf16.xpose.msra.mxu0 %v606
        %620 = vmatpush.bf16.xpose.msra.mxu0 %v605
        %621 = vmatpush.bf16.xpose.msra.mxu0 %v604
        %622 = vmatpush.bf16.xpose.msra.mxu0 %v603
        %623 = vmatpush.bf16.xpose.msra.mxu0 %v602
        %624 = vmatpush.bf16.xpose.msra.mxu0 %v601
        %625 = vmatmul.bf16.gmra.mxu0 %v553
        %v626 = vpop.f32.mrf.mxu0
        %v627 = vadd.f32 0.0, %v626
        %v628 = vpop.f32.mrf.mxu0
        %v629 = vadd.f32 0.0, %v628
        %630 = vmatmul.bf16.gmra.mxu0 %v554
        %v631 = vpop.f32.mrf.mxu0
        %v632 = vadd.f32 0.0, %v631
        %v633 = vpop.f32.mrf.mxu0
        %v634 = vadd.f32 0.0, %v633
        %635 = vmatmul.bf16.gmra.mxu0 %v555
        %v636 = vpop.f32.mrf.mxu0
        %v637 = vadd.f32 0.0, %v636
        %v638 = vpop.f32.mrf.mxu0
        %v639 = vadd.f32 0.0, %v638
        %640 = vmatmul.bf16.gmra.mxu0 %v556
        %v641 = vpop.f32.mrf.mxu0
        %v642 = vadd.f32 0.0, %v641
        %v643 = vpop.f32.mrf.mxu0
        %v644 = vadd.f32 0.0, %v643
        %645 = vmatmul.bf16.gmra.mxu0 %v557
        %v646 = vpop.f32.mrf.mxu0
        %v647 = vadd.f32 0.0, %v646
        %v648 = vpop.f32.mrf.mxu0
        %v649 = vadd.f32 0.0, %v648
        %650 = vmatmul.bf16.gmra.mxu0 %v558
        %v651 = vpop.f32.mrf.mxu0
        %v652 = vadd.f32 0.0, %v651
        %v653 = vpop.f32.mrf.mxu0
        %v654 = vadd.f32 0.0, %v653
        %655 = vmatmul.bf16.gmra.mxu0 %v559
        %v656 = vpop.f32.mrf.mxu0
        %v657 = vadd.f32 0.0, %v656
        %v658 = vpop.f32.mrf.mxu0
        %v659 = vadd.f32 0.0, %v658
        %660 = vmatmul.bf16.gmra.mxu0 %v560
        %v661 = vpop.f32.mrf.mxu0
        %v662 = vadd.f32 0.0, %v661
        %v663 = vpop.f32.mrf.mxu0
        %v664 = vadd.f32 0.0, %v663
        %665 = vdwg.mxu0
        %v666 = vadd.f32 %v473, %v627
        %v667 = vadd.f32 %v474, %v629
        %v668 = vadd.f32 %v475, %v632
        %v669 = vadd.f32 %v476, %v634
        %v670 = vadd.f32 %v477, %v637
        %v671 = vadd.f32 %v478, %v639
        %v672 = vadd.f32 %v479, %v642
        %v673 = vadd.f32 %v480, %v644
        %v674 = vadd.f32 %v481, %v647
        %v675 = vadd.f32 %v482, %v649
        %v676 = vadd.f32 %v483, %v652
        %v677 = vadd.f32 %v484, %v654
        %v678 = vadd.f32 %v485, %v657
        %v679 = vadd.f32 %v486, %v659
        %v680 = vadd.f32 %v487, %v662
        %v681 = vadd.f32 %v488, %v664
        %682 = vst [vmem:[#allocation2] sm:$0xff] %v666
        %683 = vst [vmem:[#allocation2 + $0x8] sm:$0xff] %v667
        %684 = vst [vmem:[#allocation2 + $0x10] sm:$0xff] %v668
        %685 = vst [vmem:[#allocation2 + $0x18] sm:$0xff] %v669
        %686 = vst [vmem:[#allocation2 + $0x20] sm:$0xff] %v670
        %687 = vst [vmem:[#allocation2 + $0x28] sm:$0xff] %v671
        %688 = vst [vmem:[#allocation2 + $0x30] sm:$0xff] %v672
        %689 = vst [vmem:[#allocation2 + $0x38] sm:$0xff] %v673
        %690 = vst [vmem:[#allocation2 + $0x40] sm:$0xff] %v674
        %691 = vst [vmem:[#allocation2 + $0x48] sm:$0xff] %v675
        %692 = vst [vmem:[#allocation2 + $0x50] sm:$0xff] %v676
        %693 = vst [vmem:[#allocation2 + $0x58] sm:$0xff] %v677
        %694 = vst [vmem:[#allocation2 + $0x60] sm:$0xff] %v678
        %695 = vst [vmem:[#allocation2 + $0x68] sm:$0xff] %v679
        %696 = vst [vmem:[#allocation2 + $0x70] sm:$0xff] %v680
        %697 = vst [vmem:[#allocation2 + $0x78] sm:$0xff] %v681
        // Predicated region
        $region69: #{tpu_custom_call.1} parent=39 // pred_check
          %p698 = pneg %p452
        $region70: #{tpu_custom_call.1} parent=39 // pred_check_branch
          %700 = sbr.rel (%p698) target = $region72
        $region71: #{tpu_custom_call.1} parent=39 // pred_region
          %v701 = vld [vmem:[#allocation3] sm:$0xff]
          %v702 = vld [vmem:[#allocation3 + $0x8] sm:$0xff]
          %v703 = vld [vmem:[#allocation3 + $0x10] sm:$0xff]
          %v704 = vld [vmem:[#allocation3 + $0x18] sm:$0xff]
          %v705 = vld [vmem:[#allocation3 + $0x20] sm:$0xff]
          %v706 = vld [vmem:[#allocation3 + $0x28] sm:$0xff]
          %v707 = vld [vmem:[#allocation3 + $0x30] sm:$0xff]
          %v708 = vld [vmem:[#allocation3 + $0x38] sm:$0xff]
          %v709 = vld [vmem:[#allocation3 + $0x40] sm:$0xff]
          %v710 = vld [vmem:[#allocation3 + $0x48] sm:$0xff]
          %v711 = vld [vmem:[#allocation3 + $0x50] sm:$0xff]
          %v712 = vld [vmem:[#allocation3 + $0x58] sm:$0xff]
          %v713 = vld [vmem:[#allocation3 + $0x60] sm:$0xff]
          %v714 = vld [vmem:[#allocation3 + $0x68] sm:$0xff]
          %v715 = vld [vmem:[#allocation3 + $0x70] sm:$0xff]
          %v716 = vld [vmem:[#allocation3 + $0x78] sm:$0xff]
          %v717 = vld [vmem:[%s342] sm:$0xf]
          %v718 = vld [vmem:[%s342 + $0x4] sm:$0xf]
          %v719 = vld [vmem:[%s342 + $0x8] sm:$0xf]
          %v720 = vld [vmem:[%s342 + $0xc] sm:$0xf]
          %v721 = vld [vmem:[%s342 + $0x10] sm:$0xf]
          %v722 = vld [vmem:[%s342 + $0x14] sm:$0xf]
          %v723 = vld [vmem:[%s342 + $0x18] sm:$0xf]
          %v724 = vld [vmem:[%s342 + $0x1c] sm:$0xf]
          %v725 = vld [vmem:[%s342 + $0x20] sm:$0xf]
          %v726 = vld [vmem:[%s342 + $0x24] sm:$0xf]
          %v727 = vld [vmem:[%s342 + $0x28] sm:$0xf]
          %v728 = vld [vmem:[%s342 + $0x2c] sm:$0xf]
          %v729 = vld [vmem:[%s342 + $0x30] sm:$0xf]
          %v730 = vld [vmem:[%s342 + $0x34] sm:$0xf]
          %v731 = vld [vmem:[%s342 + $0x38] sm:$0xf]
          %v732 = vld [vmem:[%s342 + $0x3c] sm:$0xf]
          %v733 = vld [vmem:[%s371] sm:$0xf]
          %v734 = vld [vmem:[%s371 + $0x4] sm:$0xf]
          %v735 = vld [vmem:[%s371 + $0x8] sm:$0xf]
          %v736 = vld [vmem:[%s371 + $0xc] sm:$0xf]
          %v737 = vld [vmem:[%s371 + $0x10] sm:$0xf]
          %v738 = vld [vmem:[%s371 + $0x14] sm:$0xf]
          %v739 = vld [vmem:[%s371 + $0x18] sm:$0xf]
          %v740 = vld [vmem:[%s371 + $0x1c] sm:$0xf]
          %v741 = vld [vmem:[%s371 + $0x20] sm:$0xf]
          %v742 = vld [vmem:[%s371 + $0x24] sm:$0xf]
          %v743 = vld [vmem:[%s371 + $0x28] sm:$0xf]
          %v744 = vld [vmem:[%s371 + $0x2c] sm:$0xf]
          %v745 = vld [vmem:[%s371 + $0x30] sm:$0xf]
          %v746 = vld [vmem:[%s371 + $0x34] sm:$0xf]
          %v747 = vld [vmem:[%s371 + $0x38] sm:$0xf]
          %v748 = vld [vmem:[%s371 + $0x3c] sm:$0xf]
          %v765 = vunpack.c.l.b16 %v717
          %v766 = vunpack.c.l.b16 %v718
          %v767 = vunpack.c.l.b16 %v719
          %v768 = vunpack.c.l.b16 %v720
          %v769 = vunpack.c.l.b16 %v721
          %v770 = vunpack.c.l.b16 %v722
          %v771 = vunpack.c.l.b16 %v723
          %v772 = vunpack.c.l.b16 %v724
          %v773 = vunpack.c.l.b16 %v725
          %v774 = vunpack.c.l.b16 %v726
          %v775 = vunpack.c.l.b16 %v727
          %v776 = vunpack.c.l.b16 %v728
          %v777 = vunpack.c.l.b16 %v729
          %v778 = vunpack.c.l.b16 %v730
          %v779 = vunpack.c.l.b16 %v731
          %v780 = vunpack.c.l.b16 %v732
          %v781 = vpack.c.b16 %v766, %v765
          %v782 = vpack.c.b16 %v768, %v767
          %v783 = vpack.c.b16 %v770, %v769
          %v784 = vpack.c.b16 %v772, %v771
          %v785 = vpack.c.b16 %v774, %v773
          %v786 = vpack.c.b16 %v776, %v775
          %v787 = vpack.c.b16 %v778, %v777
          %v788 = vpack.c.b16 %v780, %v779
          %v813 = vunpack.c.l.b16 %v733
          %v814 = vunpack.c.l.b16 %v734
          %v815 = vunpack.c.l.b16 %v735
          %v816 = vunpack.c.l.b16 %v736
          %v817 = vunpack.c.l.b16 %v737
          %v818 = vunpack.c.l.b16 %v738
          %v819 = vunpack.c.l.b16 %v739
          %v820 = vunpack.c.l.b16 %v740
          %v821 = vunpack.c.l.b16 %v741
          %v822 = vunpack.c.l.b16 %v742
          %v823 = vunpack.c.l.b16 %v743
          %v824 = vunpack.c.l.b16 %v744
          %v825 = vunpack.c.l.b16 %v745
          %v826 = vunpack.c.l.b16 %v746
          %v827 = vunpack.c.l.b16 %v747
          %v828 = vunpack.c.l.b16 %v748
          %v829 = vpack.c.b16 %v814, %v813
          %v830 = vpack.c.b16 %v816, %v815
          %v831 = vpack.c.b16 %v818, %v817
          %v832 = vpack.c.b16 %v820, %v819
          %v833 = vpack.c.b16 %v822, %v821
          %v834 = vpack.c.b16 %v824, %v823
          %v835 = vpack.c.b16 %v826, %v825
          %v836 = vpack.c.b16 %v828, %v827
          %845 = vmatpush.bf16.xpose.msra.mxu0 %v836
          %846 = vmatpush.bf16.xpose.msra.mxu0 %v835
          %847 = vmatpush.bf16.xpose.msra.mxu0 %v834
          %848 = vmatpush.bf16.xpose.msra.mxu0 %v833
          %849 = vmatpush.bf16.xpose.msra.mxu0 %v832
          %850 = vmatpush.bf16.xpose.msra.mxu0 %v831
          %851 = vmatpush.bf16.xpose.msra.mxu0 %v830
          %852 = vmatpush.bf16.xpose.msra.mxu0 %v829
          %853 = vmatmul.bf16.gmra.mxu0 %v781
          %v854 = vpop.f32.mrf.mxu0
          %v855 = vadd.f32 0.0, %v854
          %v856 = vpop.f32.mrf.mxu0
          %v857 = vadd.f32 0.0, %v856
          %858 = vmatmul.bf16.gmra.mxu0 %v782
          %v859 = vpop.f32.mrf.mxu0
          %v860 = vadd.f32 0.0, %v859
          %v861 = vpop.f32.mrf.mxu0
          %v862 = vadd.f32 0.0, %v861
          %863 = vmatmul.bf16.gmra.mxu0 %v783
          %v864 = vpop.f32.mrf.mxu0
          %v865 = vadd.f32 0.0, %v864
          %v866 = vpop.f32.mrf.mxu0
          %v867 = vadd.f32 0.0, %v866
          %868 = vmatmul.bf16.gmra.mxu0 %v784
          %v869 = vpop.f32.mrf.mxu0
          %v870 = vadd.f32 0.0, %v869
          %v871 = vpop.f32.mrf.mxu0
          %v872 = vadd.f32 0.0, %v871
          %873 = vmatmul.bf16.gmra.mxu0 %v785
          %v874 = vpop.f32.mrf.mxu0
          %v875 = vadd.f32 0.0, %v874
          %v876 = vpop.f32.mrf.mxu0
          %v877 = vadd.f32 0.0, %v876
          %878 = vmatmul.bf16.gmra.mxu0 %v786
          %v879 = vpop.f32.mrf.mxu0
          %v880 = vadd.f32 0.0, %v879
          %v881 = vpop.f32.mrf.mxu0
          %v882 = vadd.f32 0.0, %v881
          %883 = vmatmul.bf16.gmra.mxu0 %v787
          %v884 = vpop.f32.mrf.mxu0
          %v885 = vadd.f32 0.0, %v884
          %v886 = vpop.f32.mrf.mxu0
          %v887 = vadd.f32 0.0, %v886
          %888 = vmatmul.bf16.gmra.mxu0 %v788
          %v889 = vpop.f32.mrf.mxu0
          %v890 = vadd.f32 0.0, %v889
          %v891 = vpop.f32.mrf.mxu0
          %v892 = vadd.f32 0.0, %v891
          %893 = vdwg.mxu0
          %v894 = vadd.f32 %v701, %v855
          %v895 = vadd.f32 %v702, %v857
          %v896 = vadd.f32 %v703, %v860
          %v897 = vadd.f32 %v704, %v862
          %v898 = vadd.f32 %v705, %v865
          %v899 = vadd.f32 %v706, %v867
          %v900 = vadd.f32 %v707, %v870
          %v901 = vadd.f32 %v708, %v872
          %v902 = vadd.f32 %v709, %v875
          %v903 = vadd.f32 %v710, %v877
          %v904 = vadd.f32 %v711, %v880
          %v905 = vadd.f32 %v712, %v882
          %v906 = vadd.f32 %v713, %v885
          %v907 = vadd.f32 %v714, %v887
          %v908 = vadd.f32 %v715, %v890
          %v909 = vadd.f32 %v716, %v892
          %910 = vst [vmem:[#allocation3] sm:$0xff] %v894
          %911 = vst [vmem:[#allocation3 + $0x8] sm:$0xff] %v895
          %912 = vst [vmem:[#allocation3 + $0x10] sm:$0xff] %v896
          %913 = vst [vmem:[#allocation3 + $0x18] sm:$0xff] %v897
          %914 = vst [vmem:[#allocation3 + $0x20] sm:$0xff] %v898
          %915 = vst [vmem:[#allocation3 + $0x28] sm:$0xff] %v899
          %916 = vst [vmem:[#allocation3 + $0x30] sm:$0xff] %v900
          %917 = vst [vmem:[#allocation3 + $0x38] sm:$0xff] %v901
          %918 = vst [vmem:[#allocation3 + $0x40] sm:$0xff] %v902
          %919 = vst [vmem:[#allocation3 + $0x48] sm:$0xff] %v903
          %920 = vst [vmem:[#allocation3 + $0x50] sm:$0xff] %v904
          %921 = vst [vmem:[#allocation3 + $0x58] sm:$0xff] %v905
          %922 = vst [vmem:[#allocation3 + $0x60] sm:$0xff] %v906
          %923 = vst [vmem:[#allocation3 + $0x68] sm:$0xff] %v907
          %924 = vst [vmem:[#allocation3 + $0x70] sm:$0xff] %v908
          %925 = vst [vmem:[#allocation3 + $0x78] sm:$0xff] %v909
        $region72: #{tpu_custom_call.1} parent=39 // pred_fallthru
          _
        %p926 = scmp.eq.s32.totalorder %s35, 1
        // Predicated region
        $region73: #{tpu_custom_call.1} parent=39 // pred_check
          %p927 = pneg %p926
        $region74: #{tpu_custom_call.1} parent=39 // pred_check_branch
          %929 = sbr.rel (%p927) target = $region76
        $region75: #{tpu_custom_call.1} parent=39 // pred_region
          %v930 = vld [vmem:[#allocation3] sm:$0xff]
          %v931 = vld [vmem:[#allocation3 + $0x8] sm:$0xff]
          %v932 = vld [vmem:[#allocation3 + $0x10] sm:$0xff]
          %v933 = vld [vmem:[#allocation3 + $0x18] sm:$0xff]
          %v934 = vld [vmem:[#allocation3 + $0x20] sm:$0xff]
          %v935 = vld [vmem:[#allocation3 + $0x28] sm:$0xff]
          %v936 = vld [vmem:[#allocation3 + $0x30] sm:$0xff]
          %v937 = vld [vmem:[#allocation3 + $0x38] sm:$0xff]
          %v938 = vld [vmem:[#allocation3 + $0x40] sm:$0xff]
          %v939 = vld [vmem:[#allocation3 + $0x48] sm:$0xff]
          %v940 = vld [vmem:[#allocation3 + $0x50] sm:$0xff]
          %v941 = vld [vmem:[#allocation3 + $0x58] sm:$0xff]
          %v942 = vld [vmem:[#allocation3 + $0x60] sm:$0xff]
          %v943 = vld [vmem:[#allocation3 + $0x68] sm:$0xff]
          %v944 = vld [vmem:[#allocation3 + $0x70] sm:$0xff]
          %v945 = vld [vmem:[#allocation3 + $0x78] sm:$0xff]
          %v946 = vpack.c.bf16 %v931, %v930
          %v947 = vpack.c.bf16 %v933, %v932
          %v948 = vpack.c.bf16 %v935, %v934
          %v949 = vpack.c.bf16 %v937, %v936
          %v950 = vpack.c.bf16 %v939, %v938
          %v951 = vpack.c.bf16 %v941, %v940
          %v952 = vpack.c.bf16 %v943, %v942
          %v953 = vpack.c.bf16 %v945, %v944
          %v954 = vld [vmem:[%s381] sm:$0xf]
          %v955 = vld [vmem:[%s381 + $0x4] sm:$0xf]
          %v956 = vld [vmem:[%s381 + $0x8] sm:$0xf]
          %v957 = vld [vmem:[%s381 + $0xc] sm:$0xf]
          %v958 = vld [vmem:[%s381 + $0x10] sm:$0xf]
          %v959 = vld [vmem:[%s381 + $0x14] sm:$0xf]
          %v960 = vld [vmem:[%s381 + $0x18] sm:$0xf]
          %v961 = vld [vmem:[%s381 + $0x1c] sm:$0xf]
          %v962 = vld [vmem:[%s381 + $0x20] sm:$0xf]
          %v963 = vld [vmem:[%s381 + $0x24] sm:$0xf]
          %v964 = vld [vmem:[%s381 + $0x28] sm:$0xf]
          %v965 = vld [vmem:[%s381 + $0x2c] sm:$0xf]
          %v966 = vld [vmem:[%s381 + $0x30] sm:$0xf]
          %v967 = vld [vmem:[%s381 + $0x34] sm:$0xf]
          %v968 = vld [vmem:[%s381 + $0x38] sm:$0xf]
          %v969 = vld [vmem:[%s381 + $0x3c] sm:$0xf]
          %v986 = vunpack.c.l.b16 %v954
          %v987 = vunpack.c.l.b16 %v955
          %v988 = vunpack.c.l.b16 %v956
          %v989 = vunpack.c.l.b16 %v957
          %v990 = vunpack.c.l.b16 %v958
          %v991 = vunpack.c.l.b16 %v959
          %v992 = vunpack.c.l.b16 %v960
          %v993 = vunpack.c.l.b16 %v961
          %v994 = vunpack.c.l.b16 %v962
          %v995 = vunpack.c.l.b16 %v963
          %v996 = vunpack.c.l.b16 %v964
          %v997 = vunpack.c.l.b16 %v965
          %v998 = vunpack.c.l.b16 %v966
          %v999 = vunpack.c.l.b16 %v967
          %v1000 = vunpack.c.l.b16 %v968
          %v1001 = vunpack.c.l.b16 %v969
          %v1002 = vpack.c.b16 %v987, %v986
          %v1003 = vpack.c.b16 %v989, %v988
          %v1004 = vpack.c.b16 %v991, %v990
          %v1005 = vpack.c.b16 %v993, %v992
          %v1006 = vpack.c.b16 %v995, %v994
          %v1007 = vpack.c.b16 %v997, %v996
          %v1008 = vpack.c.b16 %v999, %v998
          %v1009 = vpack.c.b16 %v1001, %v1000
          %1018 = vmatpush.bf16.xpose.msra.mxu0 %v1009
          %1019 = vmatpush.bf16.xpose.msra.mxu0 %v1008
          %1020 = vmatpush.bf16.xpose.msra.mxu0 %v1007
          %1021 = vmatpush.bf16.xpose.msra.mxu0 %v1006
          %1022 = vmatpush.bf16.xpose.msra.mxu0 %v1005
          %1023 = vmatpush.bf16.xpose.msra.mxu0 %v1004
          %1024 = vmatpush.bf16.xpose.msra.mxu0 %v1003
          %1025 = vmatpush.bf16.xpose.msra.mxu0 %v1002
          %1026 = vmatmul.bf16.gmra.mxu0 %v946
          %v1027 = vpop.f32.mrf.mxu0
          %v1028 = vadd.f32 0.0, %v1027
          %v1029 = vpop.f32.mrf.mxu0
          %v1030 = vadd.f32 0.0, %v1029
          %1031 = vmatmul.bf16.gmra.mxu0 %v947
          %v1032 = vpop.f32.mrf.mxu0
          %v1033 = vadd.f32 0.0, %v1032
          %v1034 = vpop.f32.mrf.mxu0
          %v1035 = vadd.f32 0.0, %v1034
          %1036 = vmatmul.bf16.gmra.mxu0 %v948
          %v1037 = vpop.f32.mrf.mxu0
          %v1038 = vadd.f32 0.0, %v1037
          %v1039 = vpop.f32.mrf.mxu0
          %v1040 = vadd.f32 0.0, %v1039
          %1041 = vmatmul.bf16.gmra.mxu0 %v949
          %v1042 = vpop.f32.mrf.mxu0
          %v1043 = vadd.f32 0.0, %v1042
          %v1044 = vpop.f32.mrf.mxu0
          %v1045 = vadd.f32 0.0, %v1044
          %1046 = vmatmul.bf16.gmra.mxu0 %v950
          %v1047 = vpop.f32.mrf.mxu0
          %v1048 = vadd.f32 0.0, %v1047
          %v1049 = vpop.f32.mrf.mxu0
          %v1050 = vadd.f32 0.0, %v1049
          %1051 = vmatmul.bf16.gmra.mxu0 %v951
          %v1052 = vpop.f32.mrf.mxu0
          %v1053 = vadd.f32 0.0, %v1052
          %v1054 = vpop.f32.mrf.mxu0
          %v1055 = vadd.f32 0.0, %v1054
          %1056 = vmatmul.bf16.gmra.mxu0 %v952
          %v1057 = vpop.f32.mrf.mxu0
          %v1058 = vadd.f32 0.0, %v1057
          %v1059 = vpop.f32.mrf.mxu0
          %v1060 = vadd.f32 0.0, %v1059
          %1061 = vmatmul.bf16.gmra.mxu0 %v953
          %v1062 = vpop.f32.mrf.mxu0
          %v1063 = vadd.f32 0.0, %v1062
          %v1064 = vpop.f32.mrf.mxu0
          %v1065 = vadd.f32 0.0, %v1064
          %1066 = vdwg.mxu0
          %v1067 = vld [vmem:[#allocation2] sm:$0xff]
          %v1068 = vld [vmem:[#allocation2 + $0x8] sm:$0xff]
          %v1069 = vld [vmem:[#allocation2 + $0x10] sm:$0xff]
          %v1070 = vld [vmem:[#allocation2 + $0x18] sm:$0xff]
          %v1071 = vld [vmem:[#allocation2 + $0x20] sm:$0xff]
          %v1072 = vld [vmem:[#allocation2 + $0x28] sm:$0xff]
          %v1073 = vld [vmem:[#allocation2 + $0x30] sm:$0xff]
          %v1074 = vld [vmem:[#allocation2 + $0x38] sm:$0xff]
          %v1075 = vld [vmem:[#allocation2 + $0x40] sm:$0xff]
          %v1076 = vld [vmem:[#allocation2 + $0x48] sm:$0xff]
          %v1077 = vld [vmem:[#allocation2 + $0x50] sm:$0xff]
          %v1078 = vld [vmem:[#allocation2 + $0x58] sm:$0xff]
          %v1079 = vld [vmem:[#allocation2 + $0x60] sm:$0xff]
          %v1080 = vld [vmem:[#allocation2 + $0x68] sm:$0xff]
          %v1081 = vld [vmem:[#allocation2 + $0x70] sm:$0xff]
          %v1082 = vld [vmem:[#allocation2 + $0x78] sm:$0xff]
          %v1083 = vld [vmem:[%s361] sm:$0x1]
          %v1085 = vperm.slane %v1083, 0
          %v1087 = vadd.f32 %v1067, %v1085
          %v1088 = vadd.f32 %v1068, %v1085
          %v1089 = vadd.f32 %v1069, %v1085
          %v1090 = vadd.f32 %v1070, %v1085
          %v1091 = vadd.f32 %v1071, %v1085
          %v1092 = vadd.f32 %v1072, %v1085
          %v1093 = vadd.f32 %v1073, %v1085
          %v1094 = vadd.f32 %v1074, %v1085
          %v1095 = vadd.f32 %v1075, %v1085
          %v1096 = vadd.f32 %v1076, %v1085
          %v1097 = vadd.f32 %v1077, %v1085
          %v1098 = vadd.f32 %v1078, %v1085
          %v1099 = vadd.f32 %v1079, %v1085
          %v1100 = vadd.f32 %v1080, %v1085
          %v1101 = vadd.f32 %v1081, %v1085
          %v1102 = vadd.f32 %v1082, %v1085
          %v1103 = vadd.f32 %v1087, %v1028
          %v1104 = vadd.f32 %v1088, %v1030
          %v1105 = vadd.f32 %v1089, %v1033
          %v1106 = vadd.f32 %v1090, %v1035
          %v1107 = vadd.f32 %v1091, %v1038
          %v1108 = vadd.f32 %v1092, %v1040
          %v1109 = vadd.f32 %v1093, %v1043
          %v1110 = vadd.f32 %v1094, %v1045
          %v1111 = vadd.f32 %v1095, %v1048
          %v1112 = vadd.f32 %v1096, %v1050
          %v1113 = vadd.f32 %v1097, %v1053
          %v1114 = vadd.f32 %v1098, %v1055
          %v1115 = vadd.f32 %v1099, %v1058
          %v1116 = vadd.f32 %v1100, %v1060
          %v1117 = vadd.f32 %v1101, %v1063
          %v1118 = vadd.f32 %v1102, %v1065
          %1119 = vst [vmem:[%s427] sm:$0xff] %v1103
          %1120 = vst [vmem:[%s427 + $0x8] sm:$0xff] %v1104
          %1121 = vst [vmem:[%s427 + $0x10] sm:$0xff] %v1105
          %1122 = vst [vmem:[%s427 + $0x18] sm:$0xff] %v1106
          %1123 = vst [vmem:[%s427 + $0x20] sm:$0xff] %v1107
          %1124 = vst [vmem:[%s427 + $0x28] sm:$0xff] %v1108
          %1125 = vst [vmem:[%s427 + $0x30] sm:$0xff] %v1109
          %1126 = vst [vmem:[%s427 + $0x38] sm:$0xff] %v1110
          %1127 = vst [vmem:[%s427 + $0x40] sm:$0xff] %v1111
          %1128 = vst [vmem:[%s427 + $0x48] sm:$0xff] %v1112
          %1129 = vst [vmem:[%s427 + $0x50] sm:$0xff] %v1113
          %1130 = vst [vmem:[%s427 + $0x58] sm:$0xff] %v1114
          %1131 = vst [vmem:[%s427 + $0x60] sm:$0xff] %v1115
          %1132 = vst [vmem:[%s427 + $0x68] sm:$0xff] %v1116
          %1133 = vst [vmem:[%s427 + $0x70] sm:$0xff] %v1117
          %1134 = vst [vmem:[%s427 + $0x78] sm:$0xff] %v1118
        $region76: #{tpu_custom_call.1} parent=39 // pred_fallthru
          _
        %s1135 = sand.u32 %s191, 1
        %s1136 = scalar_lea.sflag [#allocation6], %s1135
        %s1137 = sand.u32 %s191, 1
        %s1138 = smul.addr %s1137, 128
        %s1139 = scalar_lea.vmem [#allocation13], %s1138
        // Predicated region
        $region77: #{tpu_custom_call.1} parent=39 // pred_check
          %p1140 = pneg %p201
        $region78: #{tpu_custom_call.1} parent=39 // pred_check_branch
          %1142 = sbr.rel (%p1140) target = $region80
        $region79: #{tpu_custom_call.1} parent=39 // pred_region
          %s1143 = smul.u32 16, %s33
          %1145 = vsyncadd %s1136, 0
          %s1146 = smul.addr %s1143, 3
          %s1147 = sadd.s32 %s34, %s1146
          %s1148 = smul.addr %s1147, 8
          %s1149 = scalar_lea.hbm %s5, %s1148
          %s1150 = sshll.u32 %s1139, 4
          %s1151 = int_to_ptr.vmem [resolvable:$true] %s1150
          %s1152 = sshll.u32 %s1149, 4
          %s1153 = int_to_ptr.hbm [resolvable:$true] %s1152
          %1158 = dma.vmem_to_hbm [thread:$0]  %s1151, 2048, %s1153, %s1136, 128, 384, 8
        $region80: #{tpu_custom_call.1} parent=39 // pred_fallthru
          _
      $region40: #{tpu_custom_call.1} parent=5 // pred_fallthru
        _
      %p1159 = scmp.le.s32.totalorder 2, %s23
      // Predicated region
      $region81: #{tpu_custom_call.1} parent=5 // pred_check
        %p1160 = pneg %p1159
      $region82: #{tpu_custom_call.1} parent=5 // pred_check_branch
        %1162 = sbr.rel (%p1160) target = $region84
      $region83: #{tpu_custom_call.1} parent=5 // pred_region
        %s1163 = ssub.s32 %s23, 2
        // Predicated region
        $region85: #{tpu_custom_call.1} parent=83 // pred_check
          %p1164 = pneg %p207
        $region86: #{tpu_custom_call.1} parent=83 // pred_check_branch
          %1166 = sbr.rel (%p1164) target = $region88
        $region87: #{tpu_custom_call.1} parent=83 // pred_region
          %s1167 = sand.u32 %s192, 1
          %s1168 = scalar_lea.sflag [#allocation6], %s1167
          %s1169 = sand.u32 %s192, 1
          %s1170 = smul.addr %s1169, 128
          %s1171 = scalar_lea.vmem [#allocation13], %s1170
          %1173 = dma.done %s1168, 2048
        $region88: #{tpu_custom_call.1} parent=83 // pred_fallthru
          _
      $region84: #{tpu_custom_call.1} parent=5 // pred_fallthru
        _
    $region6: #{tpu_custom_call.1} parent=1 // loop_footer
      %s27 = sadd.s32 1, %s23
    $region7: #{tpu_custom_call.1} parent=1 // loop_footer_branch
      %22 = sbr.rel target = $region3
    $region8: #{tpu_custom_call.1} parent=1 // loop_exit
      _
    %1174 = vsyncpa [#allocation5], 1
    %s1175 = scalar_lea.sflag [#allocation5], 1
    %1176 = vsyncpa %s1175, 1
    %1177 = vsyncpa [#allocation8], 1
    %s1178 = scalar_lea.sflag [#allocation8], 1
    %1179 = vsyncpa %s1178, 1
    %1180 = vsyncpa [#allocation11], 1
    %s1181 = scalar_lea.sflag [#allocation11], 1
    %1182 = vsyncpa %s1181, 1
    %1183 = vsyncpa [#allocation6], 1
    %s1184 = scalar_lea.sflag [#allocation6], 1
    %1185 = vsyncpa %s1184, 1

</llo_original>
